<compile_context>
chip_gen: v5e
topology: v5e:2x2
jax: 0.10.0
libtpu: 0.0.40
codegen_flags: <defaults>
</compile_context>

<pallas_src>
import functools

import numpy as np

import jax
import jax.numpy as jnp
from jax.experimental import pallas as pl
from jax.experimental.pallas import tpu as pltpu


def _lane_shift(x, d, n):
    """y[..., p] = x[..., (p + d) % n] for a static shift d (any sign)."""
    d = d % n
    if d == 0:
        return x
    return jnp.concatenate([x[..., d:], x[..., :d]], axis=-1)


def _resblock_kernel(x_ref, masks_ref, w1_ref, b1_ref, w2_ref, b2_ref, o_ref,
                     patches_ref, *, height, width):
    # x_ref       : (nb, Cin, H*W)     raw input block (also the residual)
    # masks_ref   : (9, H*W)           0/1 boundary masks, one per 3x3 tap
    # w1_ref      : (C, 9*Cin)         3x3 conv weights, im2col layout
    # b1_ref      : (C, 1)
    # w2_ref      : (Cin, C)           1x1 conv weights
    # b2_ref      : (Cin, 1)
    # o_ref       : (nb, Cin, H*W)
    # patches_ref : (nb, 9*Cin, H*W)   VMEM scratch (im2col matrix)
    nb, cin, hw = x_ref.shape
    cmid = w1_ref.shape[0]

    x = x_ref[...]                                     # (nb, Cin, HW)
    xr = jnp.maximum(x, 0.0)                           # ReLU before the 3x3 conv
    masks = masks_ref[...]                             # (9, HW)

    # Build the im2col matrix: 9 shifted + boundary-masked copies of xr.
    # Masking the out-of-range taps to zero is exactly "same" zero padding
    # (and ReLU(0) == 0, so relu-then-pad == pad-then-relu).
    for dy in (-1, 0, 1):
        for dx in (-1, 0, 1):
            t = (dy + 1) * 3 + (dx + 1)
            shifted = _lane_shift(xr, dy * width + dx, hw)
            tap = shifted * masks[t][None, None, :]    # zero the wrapped lanes
            patches_ref[:, pl.ds(t * cin, cin), :] = tap

    patches = patches_ref[...]                         # (nb, 9*Cin, HW)

    # 3x3 conv as one batched matmul: (nb, C, 9*Cin) x (nb, 9*Cin, HW).
    w1b = jnp.broadcast_to(w1_ref[...], (nb, cmid, 9 * cin))
    h = jax.lax.dot_general(
        w1b, patches,
        dimension_numbers=(((2,), (1,)), ((0,), (0,))),
        preferred_element_type=jnp.float32)            # (nb, C, HW)
    h = jnp.maximum(h + b1_ref[...][None], 0.0)        # bias + ReLU

    # 1x1 conv as a batched matmul: (nb, Cin, C) x (nb, C, HW).
    w2b = jnp.broadcast_to(w2_ref[...], (nb, cin, cmid))
    y = jax.lax.dot_general(
        w2b, h,
        dimension_numbers=(((2,), (1,)), ((0,), (0,))),
        preferred_element_type=jnp.float32)            # (nb, Cin, HW)
    y = y + b2_ref[...][None] + x                      # bias + residual

    o_ref[...] = y.astype(o_ref.dtype)


def _pick_batch_block(n, per_image_bytes, target_bytes=256 * 1024):
    """Largest divisor of n under the byte target, preferring >= 2 grid steps
    (so both TensorCores of a v7x chip get a parallel unit of work)."""
    best = 1
    for nb in range(1, n + 1):
        if n % nb:
            continue
        if nb * per_image_bytes > target_bytes:
            continue
        if n // nb >= 2 or n == 1:
            best = nb
    return best


def resblock_forward(x, w1, b1, w2, b2, *, block_batch=None):
    """ResBlock forward.

    x : (N, Cin, H, W) float32, NCHW (PyTorch layout).
    w1: (C, Cin, 3, 3) OIHW      b1: (C,)
    w2: (Cin, C)  (1x1 conv weight with trailing 1x1 squeezed)      b2: (Cin,)
    """
    n, cin, height, width = x.shape
    cmid = w1.shape[0]
    hw = height * width

    # Free row-major reshape: spatial goes onto the lane-dense last axis.
    x_flat = x.reshape(n, cin, hw)

    # Tiny host-side weight repack: w1m[c, (kh*3+kw)*Cin + ci] = w1[c, ci, kh, kw].
    w1m = jnp.transpose(w1, (0, 2, 3, 1)).reshape(cmid, 9 * cin)
    b1c = b1.reshape(cmid, 1)
    w2m = w2.reshape(cin, cmid)
    b2c = b2.reshape(cin, 1)

    # Precompute the 9 boundary masks (one per 3x3 tap) on the host.
    masks_np = np.zeros((9, hw), np.float32)
    for dy in (-1, 0, 1):
        for dx in (-1, 0, 1):
            t = (dy + 1) * 3 + (dx + 1)
            m = np.zeros((height, width), np.float32)
            m[max(0, -dy):min(height, height - dy),
              max(0, -dx):min(width, width - dx)] = 1.0
            masks_np[t] = m.reshape(-1)
    masks = jnp.asarray(masks_np)

    nb = block_batch if block_batch is not None else _pick_batch_block(
        n, cin * hw * x.dtype.itemsize)
    assert n % nb == 0, "batch block must divide N"
    grid = (n // nb,)

    # TODO(synk): for production shapes (H, W, C >= 128) add an H-tiled grid
    # axis with a 1-row halo and set vmem_limit_bytes so blocks fit v7x's
    # 64 MiB VMEM; bf16 activation storage (v6e suggestion) is skipped here to
    # preserve f32 parity with the reference at 1e-4 tolerance.
    kernel = functools.partial(_resblock_kernel, height=height, width=width)

    out_flat = pl.pallas_call(
        kernel,
        out_shape=jax.ShapeDtypeStruct((n, cin, hw), x.dtype),
        grid=grid,
        in_specs=[
            pl.BlockSpec((nb, cin, hw), lambda i: (i, 0, 0)),
            pl.BlockSpec((9, hw), lambda i: (0, 0)),
            pl.BlockSpec((cmid, 9 * cin), lambda i: (0, 0)),
            pl.BlockSpec((cmid, 1), lambda i: (0, 0)),
            pl.BlockSpec((cin, cmid), lambda i: (0, 0)),
            pl.BlockSpec((cin, 1), lambda i: (0, 0)),
        ],
        out_specs=pl.BlockSpec((nb, cin, hw), lambda i: (i, 0, 0)),
        scratch_shapes=[pltpu.VMEM((nb, 9 * cin, hw), jnp.float32)],
        compiler_params=pltpu.CompilerParams(
            dimension_semantics=("parallel",)),
    )(x_flat, masks, w1m, b1c, w2m, b2c)

    return out_flat.reshape(n, cin, height, width)


def resblock_reference(x, w1, b1, w2, b2):
    """Pure-JAX NCHW reference matching the PyTorch ResBlock forward."""
    cin, cmid = w2.shape
    xr = jax.nn.relu(x)
    y = jax.lax.conv_general_dilated(
        xr, w1, window_strides=(1, 1), padding="SAME",
        dimension_numbers=("NCHW", "OIHW", "NCHW")) + b1.reshape(1, -1, 1, 1)
    y = jax.nn.relu(y)
    z = jax.lax.conv_general_dilated(
        y, w2.reshape(cin, cmid, 1, 1), window_strides=(1, 1), padding="SAME",
        dimension_numbers=("NCHW", "OIHW", "NCHW")) + b2.reshape(1, -1, 1, 1)
    return z + x


if __name__ == "__main__":
    # Small shapes consistent with the module: ResBlock(in_channel=4, channel=8),
    # input NCHW (2, 4, 16, 16).
    N, Cin, C, H, W = 2, 4, 8, 16, 16

    key = jax.random.PRNGKey(0)
    kx, k1, k2, k3, k4 = jax.random.split(key, 5)

    x = jax.random.normal(kx, (N, Cin, H, W), dtype=jnp.float32)
    # Deterministic synthetic parameters (PyTorch-like fan-in scaling, PyTorch layouts).
    w1 = jax.random.normal(k1, (C, Cin, 3, 3), dtype=jnp.float32) * (1.0 / (3 * 3 * Cin)) ** 0.5
    b1 = jax.random.normal(k2, (C,), dtype=jnp.float32) * 0.1
    w2 = jax.random.normal(k3, (Cin, C), dtype=jnp.float32) * (1.0 / C) ** 0.5
    b2 = jax.random.normal(k4, (Cin,), dtype=jnp.float32) * 0.1

    out = resblock_forward(x, w1, b1, w2, b2)
    out = jax.block_until_ready(out)

    ref = resblock_reference(x, w1, b1, w2, b2)
    assert out.shape == (N, Cin, H, W)
    assert jnp.allclose(out, ref, atol=1e-4, rtol=1e-4), "mismatch vs reference"

    print("KERNEL_OK")
</pallas_src>

<mosaic_0001>
module attributes {stable_mosaic.version = 11 : i64} {
  func.func @_resblock_kernel(%arg0: i32, %arg1: memref<1x4x256xf32, #tpu.memory_space<vmem>>, %arg2: memref<9x256xf32, #tpu.memory_space<vmem>>, %arg3: memref<8x36xf32, #tpu.memory_space<vmem>>, %arg4: memref<8x1xf32, #tpu.memory_space<vmem>>, %arg5: memref<4x8xf32, #tpu.memory_space<vmem>>, %arg6: memref<4x1xf32, #tpu.memory_space<vmem>>, %arg7: memref<1x4x256xf32, #tpu.memory_space<vmem>>, %arg8: memref<1x36x256xf32, #tpu.memory_space<vmem>>) attributes {dimension_semantics = [#tpu.dimension_semantics<parallel>], iteration_bounds = array<i64: 2>, scalar_prefetch = 0 : i64, scratch_operands = 1 : i64, tpu.core_type = #tpu.core_type<tc>, window_params = [{transform_indices = @transform_0, window_bounds = array<i64: 1, 4, 256>}, {pipeline_mode = #tpu.pipeline_mode<synchronous>, transform_indices = @transform_1, window_bounds = array<i64: 9, 256>}, {pipeline_mode = #tpu.pipeline_mode<synchronous>, transform_indices = @transform_2, window_bounds = array<i64: 8, 36>}, {pipeline_mode = #tpu.pipeline_mode<synchronous>, transform_indices = @transform_3, window_bounds = array<i64: 8, 1>}, {pipeline_mode = #tpu.pipeline_mode<synchronous>, transform_indices = @transform_4, window_bounds = array<i64: 4, 8>}, {pipeline_mode = #tpu.pipeline_mode<synchronous>, transform_indices = @transform_5, window_bounds = array<i64: 4, 1>}, {transform_indices = @transform_6, window_bounds = array<i64: 1, 4, 256>}]} {
    %c0 = arith.constant 0 : index
    %c0_0 = arith.constant 0 : index
    %c0_1 = arith.constant 0 : index
    %0 = vector.load %arg1[%c0, %c0_0, %c0_1] : memref<1x4x256xf32, #tpu.memory_space<vmem>>, vector<1x4x256xf32>
    %cst = arith.constant 0.000000e+00 : f32
    %1 = vector.broadcast %cst : f32 to vector<1x4x256xf32>
    %2 = arith.maximumf %0, %1 : vector<1x4x256xf32>
    %c0_2 = arith.constant 0 : index
    %c0_3 = arith.constant 0 : index
    %3 = vector.load %arg2[%c0_2, %c0_3] : memref<9x256xf32, #tpu.memory_space<vmem>>, vector<9x256xf32>
    %4 = vector.extract_strided_slice %2 {offsets = [0, 0, 239], sizes = [1, 4, 17], strides = [1, 1, 1]} : vector<1x4x256xf32> to vector<1x4x17xf32>
    %5 = vector.extract_strided_slice %2 {offsets = [0, 0, 0], sizes = [1, 4, 239], strides = [1, 1, 1]} : vector<1x4x256xf32> to vector<1x4x239xf32>
    %6 = tpu.concatenate %4, %5 in 2 : vector<1x4x17xf32>, vector<1x4x239xf32> -> vector<1x4x256xf32>
    %7 = vector.extract_strided_slice %3 {offsets = [0, 0], sizes = [1, 256], strides = [1, 1]} : vector<9x256xf32> to vector<1x256xf32>
    %8 = vector.shape_cast %7 : vector<1x256xf32> to vector<256xf32>
    %9 = vector.shape_cast %8 : vector<256xf32> to vector<1x1x256xf32>
    %10 = vector.broadcast %9 : vector<1x1x256xf32> to vector<1x4x256xf32>
    %11 = arith.mulf %6, %10 : vector<1x4x256xf32>
    %c0_4 = arith.constant 0 : index
    %c0_5 = arith.constant 0 : index
    %c0_6 = arith.constant 0 : index
    %12 = vector.load %arg8[%c0_4, %c0_5, %c0_6] : memref<1x36x256xf32, #tpu.memory_space<vmem>>, vector<1x4x256xf32>
    tpu.vector_store %arg8[%c0_4, %c0_5, %c0_6], %11 {strides = array<i32>} : memref<1x36x256xf32, #tpu.memory_space<vmem>>, vector<1x4x256xf32>,
    %13 = vector.extract_strided_slice %2 {offsets = [0, 0, 240], sizes = [1, 4, 16], strides = [1, 1, 1]} : vector<1x4x256xf32> to vector<1x4x16xf32>
    %14 = vector.extract_strided_slice %2 {offsets = [0, 0, 0], sizes = [1, 4, 240], strides = [1, 1, 1]} : vector<1x4x256xf32> to vector<1x4x240xf32>
    %15 = tpu.concatenate %13, %14 in 2 : vector<1x4x16xf32>, vector<1x4x240xf32> -> vector<1x4x256xf32>
    %16 = vector.extract_strided_slice %3 {offsets = [1, 0], sizes = [1, 256], strides = [1, 1]} : vector<9x256xf32> to vector<1x256xf32>
    %17 = vector.shape_cast %16 : vector<1x256xf32> to vector<256xf32>
    %18 = vector.shape_cast %17 : vector<256xf32> to vector<1x1x256xf32>
    %19 = vector.broadcast %18 : vector<1x1x256xf32> to vector<1x4x256xf32>
    %20 = arith.mulf %15, %19 : vector<1x4x256xf32>
    %c0_7 = arith.constant 0 : index
    %c4 = arith.constant 4 : index
    %c0_8 = arith.constant 0 : index
    %21 = vector.load %arg8[%c0_7, %c4, %c0_8] : memref<1x36x256xf32, #tpu.memory_space<vmem>>, vector<1x4x256xf32>
    tpu.vector_store %arg8[%c0_7, %c4, %c0_8], %20 {strides = array<i32>} : memref<1x36x256xf32, #tpu.memory_space<vmem>>, vector<1x4x256xf32>,
    %22 = vector.extract_strided_slice %2 {offsets = [0, 0, 241], sizes = [1, 4, 15], strides = [1, 1, 1]} : vector<1x4x256xf32> to vector<1x4x15xf32>
    %23 = vector.extract_strided_slice %2 {offsets = [0, 0, 0], sizes = [1, 4, 241], strides = [1, 1, 1]} : vector<1x4x256xf32> to vector<1x4x241xf32>
    %24 = tpu.concatenate %22, %23 in 2 : vector<1x4x15xf32>, vector<1x4x241xf32> -> vector<1x4x256xf32>
    %25 = vector.extract_strided_slice %3 {offsets = [2, 0], sizes = [1, 256], strides = [1, 1]} : vector<9x256xf32> to vector<1x256xf32>
    %26 = vector.shape_cast %25 : vector<1x256xf32> to vector<256xf32>
    %27 = vector.shape_cast %26 : vector<256xf32> to vector<1x1x256xf32>
    %28 = vector.broadcast %27 : vector<1x1x256xf32> to vector<1x4x256xf32>
    %29 = arith.mulf %24, %28 : vector<1x4x256xf32>
    %c0_9 = arith.constant 0 : index
    %c8 = arith.constant 8 : index
    %c0_10 = arith.constant 0 : index
    %30 = vector.load %arg8[%c0_9, %c8, %c0_10] : memref<1x36x256xf32, #tpu.memory_space<vmem>>, vector<1x4x256xf32>
    tpu.vector_store %arg8[%c0_9, %c8, %c0_10], %29 {strides = array<i32>} : memref<1x36x256xf32, #tpu.memory_space<vmem>>, vector<1x4x256xf32>,
    %31 = vector.extract_strided_slice %2 {offsets = [0, 0, 255], sizes = [1, 4, 1], strides = [1, 1, 1]} : vector<1x4x256xf32> to vector<1x4x1xf32>
    %32 = vector.extract_strided_slice %2 {offsets = [0, 0, 0], sizes = [1, 4, 255], strides = [1, 1, 1]} : vector<1x4x256xf32> to vector<1x4x255xf32>
    %33 = tpu.concatenate %31, %32 in 2 : vector<1x4x1xf32>, vector<1x4x255xf32> -> vector<1x4x256xf32>
    %34 = vector.extract_strided_slice %3 {offsets = [3, 0], sizes = [1, 256], strides = [1, 1]} : vector<9x256xf32> to vector<1x256xf32>
    %35 = vector.shape_cast %34 : vector<1x256xf32> to vector<256xf32>
    %36 = vector.shape_cast %35 : vector<256xf32> to vector<1x1x256xf32>
    %37 = vector.broadcast %36 : vector<1x1x256xf32> to vector<1x4x256xf32>
    %38 = arith.mulf %33, %37 : vector<1x4x256xf32>
    %c0_11 = arith.constant 0 : index
    %c12 = arith.constant 12 : index
    %c0_12 = arith.constant 0 : index
    %39 = vector.load %arg8[%c0_11, %c12, %c0_12] : memref<1x36x256xf32, #tpu.memory_space<vmem>>, vector<1x4x256xf32>
    tpu.vector_store %arg8[%c0_11, %c12, %c0_12], %38 {strides = array<i32>} : memref<1x36x256xf32, #tpu.memory_space<vmem>>, vector<1x4x256xf32>,
    %40 = vector.extract_strided_slice %3 {offsets = [4, 0], sizes = [1, 256], strides = [1, 1]} : vector<9x256xf32> to vector<1x256xf32>
    %41 = vector.shape_cast %40 : vector<1x256xf32> to vector<256xf32>
    %42 = vector.shape_cast %41 : vector<256xf32> to vector<1x1x256xf32>
    %43 = vector.broadcast %42 : vector<1x1x256xf32> to vector<1x4x256xf32>
    %44 = arith.mulf %2, %43 : vector<1x4x256xf32>
    %c0_13 = arith.constant 0 : index
    %c16 = arith.constant 16 : index
    %c0_14 = arith.constant 0 : index
    %45 = vector.load %arg8[%c0_13, %c16, %c0_14] : memref<1x36x256xf32, #tpu.memory_space<vmem>>, vector<1x4x256xf32>
    tpu.vector_store %arg8[%c0_13, %c16, %c0_14], %44 {strides = array<i32>} : memref<1x36x256xf32, #tpu.memory_space<vmem>>, vector<1x4x256xf32>,
    %46 = vector.extract_strided_slice %2 {offsets = [0, 0, 1], sizes = [1, 4, 255], strides = [1, 1, 1]} : vector<1x4x256xf32> to vector<1x4x255xf32>
    %47 = vector.extract_strided_slice %2 {offsets = [0, 0, 0], sizes = [1, 4, 1], strides = [1, 1, 1]} : vector<1x4x256xf32> to vector<1x4x1xf32>
    %48 = tpu.concatenate %46, %47 in 2 : vector<1x4x255xf32>, vector<1x4x1xf32> -> vector<1x4x256xf32>
    %49 = vector.extract_strided_slice %3 {offsets = [5, 0], sizes = [1, 256], strides = [1, 1]} : vector<9x256xf32> to vector<1x256xf32>
    %50 = vector.shape_cast %49 : vector<1x256xf32> to vector<256xf32>
    %51 = vector.shape_cast %50 : vector<256xf32> to vector<1x1x256xf32>
    %52 = vector.broadcast %51 : vector<1x1x256xf32> to vector<1x4x256xf32>
    %53 = arith.mulf %48, %52 : vector<1x4x256xf32>
    %c0_15 = arith.constant 0 : index
    %c20 = arith.constant 20 : index
    %c0_16 = arith.constant 0 : index
    %54 = vector.load %arg8[%c0_15, %c20, %c0_16] : memref<1x36x256xf32, #tpu.memory_space<vmem>>, vector<1x4x256xf32>
    tpu.vector_store %arg8[%c0_15, %c20, %c0_16], %53 {strides = array<i32>} : memref<1x36x256xf32, #tpu.memory_space<vmem>>, vector<1x4x256xf32>,
    %55 = vector.extract_strided_slice %2 {offsets = [0, 0, 15], sizes = [1, 4, 241], strides = [1, 1, 1]} : vector<1x4x256xf32> to vector<1x4x241xf32>
    %56 = vector.extract_strided_slice %2 {offsets = [0, 0, 0], sizes = [1, 4, 15], strides = [1, 1, 1]} : vector<1x4x256xf32> to vector<1x4x15xf32>
    %57 = tpu.concatenate %55, %56 in 2 : vector<1x4x241xf32>, vector<1x4x15xf32> -> vector<1x4x256xf32>
    %58 = vector.extract_strided_slice %3 {offsets = [6, 0], sizes = [1, 256], strides = [1, 1]} : vector<9x256xf32> to vector<1x256xf32>
    %59 = vector.shape_cast %58 : vector<1x256xf32> to vector<256xf32>
    %60 = vector.shape_cast %59 : vector<256xf32> to vector<1x1x256xf32>
    %61 = vector.broadcast %60 : vector<1x1x256xf32> to vector<1x4x256xf32>
    %62 = arith.mulf %57, %61 : vector<1x4x256xf32>
    %c0_17 = arith.constant 0 : index
    %c24 = arith.constant 24 : index
    %c0_18 = arith.constant 0 : index
    %63 = vector.load %arg8[%c0_17, %c24, %c0_18] : memref<1x36x256xf32, #tpu.memory_space<vmem>>, vector<1x4x256xf32>
    tpu.vector_store %arg8[%c0_17, %c24, %c0_18], %62 {strides = array<i32>} : memref<1x36x256xf32, #tpu.memory_space<vmem>>, vector<1x4x256xf32>,
    %64 = vector.extract_strided_slice %2 {offsets = [0, 0, 16], sizes = [1, 4, 240], strides = [1, 1, 1]} : vector<1x4x256xf32> to vector<1x4x240xf32>
    %65 = vector.extract_strided_slice %2 {offsets = [0, 0, 0], sizes = [1, 4, 16], strides = [1, 1, 1]} : vector<1x4x256xf32> to vector<1x4x16xf32>
    %66 = tpu.concatenate %64, %65 in 2 : vector<1x4x240xf32>, vector<1x4x16xf32> -> vector<1x4x256xf32>
    %67 = vector.extract_strided_slice %3 {offsets = [7, 0], sizes = [1, 256], strides = [1, 1]} : vector<9x256xf32> to vector<1x256xf32>
    %68 = vector.shape_cast %67 : vector<1x256xf32> to vector<256xf32>
    %69 = vector.shape_cast %68 : vector<256xf32> to vector<1x1x256xf32>
    %70 = vector.broadcast %69 : vector<1x1x256xf32> to vector<1x4x256xf32>
    %71 = arith.mulf %66, %70 : vector<1x4x256xf32>
    %c0_19 = arith.constant 0 : index
    %c28 = arith.constant 28 : index
    %c0_20 = arith.constant 0 : index
    %72 = vector.load %arg8[%c0_19, %c28, %c0_20] : memref<1x36x256xf32, #tpu.memory_space<vmem>>, vector<1x4x256xf32>
    tpu.vector_store %arg8[%c0_19, %c28, %c0_20], %71 {strides = array<i32>} : memref<1x36x256xf32, #tpu.memory_space<vmem>>, vector<1x4x256xf32>,
    %73 = vector.extract_strided_slice %2 {offsets = [0, 0, 17], sizes = [1, 4, 239], strides = [1, 1, 1]} : vector<1x4x256xf32> to vector<1x4x239xf32>
    %74 = vector.extract_strided_slice %2 {offsets = [0, 0, 0], sizes = [1, 4, 17], strides = [1, 1, 1]} : vector<1x4x256xf32> to vector<1x4x17xf32>
    %75 = tpu.concatenate %73, %74 in 2 : vector<1x4x239xf32>, vector<1x4x17xf32> -> vector<1x4x256xf32>
    %76 = vector.extract_strided_slice %3 {offsets = [8, 0], sizes = [1, 256], strides = [1, 1]} : vector<9x256xf32> to vector<1x256xf32>
    %77 = vector.shape_cast %76 : vector<1x256xf32> to vector<256xf32>
    %78 = vector.shape_cast %77 : vector<256xf32> to vector<1x1x256xf32>
    %79 = vector.broadcast %78 : vector<1x1x256xf32> to vector<1x4x256xf32>
    %80 = arith.mulf %75, %79 : vector<1x4x256xf32>
    %c0_21 = arith.constant 0 : index
    %c32 = arith.constant 32 : index
    %c0_22 = arith.constant 0 : index
    %81 = vector.load %arg8[%c0_21, %c32, %c0_22] : memref<1x36x256xf32, #tpu.memory_space<vmem>>, vector<1x4x256xf32>
    tpu.vector_store %arg8[%c0_21, %c32, %c0_22], %80 {strides = array<i32>} : memref<1x36x256xf32, #tpu.memory_space<vmem>>, vector<1x4x256xf32>,
    %c0_23 = arith.constant 0 : index
    %c0_24 = arith.constant 0 : index
    %c0_25 = arith.constant 0 : index
    %82 = vector.load %arg8[%c0_23, %c0_24, %c0_25] : memref<1x36x256xf32, #tpu.memory_space<vmem>>, vector<1x36x256xf32>
    %c0_26 = arith.constant 0 : index
    %c0_27 = arith.constant 0 : index
    %83 = vector.load %arg3[%c0_26, %c0_27] : memref<8x36xf32, #tpu.memory_space<vmem>>, vector<8x36xf32>
    %84 = vector.shape_cast %83 : vector<8x36xf32> to vector<1x8x36xf32>
    %cst_28 = arith.constant dense<0.000000e+00> : vector<1x8x256xf32>
    %85 = tpu.matmul %84, %82, %cst_28 {dimension_numbers = #tpu.dot_dimension_numbers<[2], [1], [1], [2], [0, 0, 0, 1, 1, 2], [0], [0]>} : vector<1x8x36xf32>, vector<1x36x256xf32>, vector<1x8x256xf32> -> vector<1x8x256xf32>
    %c0_29 = arith.constant 0 : index
    %c0_30 = arith.constant 0 : index
    %86 = vector.load %arg4[%c0_29, %c0_30] : memref<8x1xf32, #tpu.memory_space<vmem>>, vector<8x1xf32>
    %87 = vector.shape_cast %86 : vector<8x1xf32> to vector<1x8x1xf32>
    %88 = vector.broadcast %87 : vector<1x8x1xf32> to vector<1x8x256xf32>
    %89 = arith.addf %85, %88 : vector<1x8x256xf32>
    %cst_31 = arith.constant 0.000000e+00 : f32
    %90 = vector.broadcast %cst_31 : f32 to vector<1x8x256xf32>
    %91 = arith.maximumf %89, %90 : vector<1x8x256xf32>
    %c0_32 = arith.constant 0 : index
    %c0_33 = arith.constant 0 : index
    %92 = vector.load %arg5[%c0_32, %c0_33] : memref<4x8xf32, #tpu.memory_space<vmem>>, vector<4x8xf32>
    %93 = vector.shape_cast %92 : vector<4x8xf32> to vector<1x4x8xf32>
    %cst_34 = arith.constant dense<0.000000e+00> : vector<1x4x256xf32>
    %94 = tpu.matmul %93, %91, %cst_34 {dimension_numbers = #tpu.dot_dimension_numbers<[2], [1], [1], [2], [0, 0, 0, 1, 1, 2], [0], [0]>} : vector<1x4x8xf32>, vector<1x8x256xf32>, vector<1x4x256xf32> -> vector<1x4x256xf32>
    %c0_35 = arith.constant 0 : index
    %c0_36 = arith.constant 0 : index
    %95 = vector.load %arg6[%c0_35, %c0_36] : memref<4x1xf32, #tpu.memory_space<vmem>>, vector<4x1xf32>
    %96 = vector.shape_cast %95 : vector<4x1xf32> to vector<1x4x1xf32>
    %97 = vector.broadcast %96 : vector<1x4x1xf32> to vector<1x4x256xf32>
    %98 = arith.addf %94, %97 : vector<1x4x256xf32>
    %99 = arith.addf %98, %0 : vector<1x4x256xf32>
    %c0_37 = arith.constant 0 : index
    %c0_38 = arith.constant 0 : index
    %c0_39 = arith.constant 0 : index
    %100 = vector.load %arg7[%c0_37, %c0_38, %c0_39] : memref<1x4x256xf32, #tpu.memory_space<vmem>>, vector<1x4x256xf32>
    tpu.vector_store %arg7[%c0_37, %c0_38, %c0_39], %99 {strides = array<i32>} : memref<1x4x256xf32, #tpu.memory_space<vmem>>, vector<1x4x256xf32>,
    return
  }
  func.func @transform_0(%arg0: i32) -> (i32, i32, i32) {
    %c0_i32 = arith.constant 0 : i32
    %c0_i32_0 = arith.constant 0 : i32
    %c0_i32_1 = arith.constant 0 : i32
    return %arg0, %c0_i32, %c0_i32_0 : i32, i32, i32
  }
  func.func @transform_1(%arg0: i32) -> (i32, i32) {
    %c0_i32 = arith.constant 0 : i32
    %c0_i32_0 = arith.constant 0 : i32
    %c0_i32_1 = arith.constant 0 : i32
    return %c0_i32, %c0_i32_0 : i32, i32
  }
  func.func @transform_2(%arg0: i32) -> (i32, i32) {
    %c0_i32 = arith.constant 0 : i32
    %c0_i32_0 = arith.constant 0 : i32
    %c0_i32_1 = arith.constant 0 : i32
    return %c0_i32, %c0_i32_0 : i32, i32
  }
  func.func @transform_3(%arg0: i32) -> (i32, i32) {
    %c0_i32 = arith.constant 0 : i32
    %c0_i32_0 = arith.constant 0 : i32
    %c0_i32_1 = arith.constant 0 : i32
    return %c0_i32, %c0_i32_0 : i32, i32
  }
  func.func @transform_4(%arg0: i32) -> (i32, i32) {
    %c0_i32 = arith.constant 0 : i32
    %c0_i32_0 = arith.constant 0 : i32
    %c0_i32_1 = arith.constant 0 : i32
    return %c0_i32, %c0_i32_0 : i32, i32
  }
  func.func @transform_5(%arg0: i32) -> (i32, i32) {
    %c0_i32 = arith.constant 0 : i32
    %c0_i32_0 = arith.constant 0 : i32
    %c0_i32_1 = arith.constant 0 : i32
    return %c0_i32, %c0_i32_0 : i32, i32
  }
  func.func @transform_6(%arg0: i32) -> (i32, i32, i32) {
    %c0_i32 = arith.constant 0 : i32
    %c0_i32_0 = arith.constant 0 : i32
    %c0_i32_1 = arith.constant 0 : i32
    return %arg0, %c0_i32, %c0_i32_0 : i32, i32, i32
  }
}

</mosaic_0001>

<llo_original>
// kernel: tpu_custom_call.1
$region0: #{tpu_custom_call.1}
  #allocation0 [shape = 'u32[]', space=smem, size = 0x4, offset = 0x4, fixed_abs, tag = 'smem constant byte address 0x4 - core index']
  #allocation1 [shape = 'u32[72,128]{1,0:T(1,128)}', space=vmem, size = 0x9000, scoped, tag = 'internal scratch']
  #allocation2 [shape = 'f32[1,36,256]{2,1,0:T(8,128)}', space=vmem, size = 0xa000, scoped, tag = 'scratch operand']
  %s0 = inlined_call_operand.hbm [shape: f32[2,4,256], index: 0, kind: input, shape index: {}]
  %s1 = inlined_call_operand.hbm [shape: f32[9,256], index: 1, kind: input, shape index: {}]
  %s2 = inlined_call_operand.vmem [shape: f32[8,36], index: 2, kind: input, shape index: {}]
  %s3 = inlined_call_operand.vmem [shape: f32[8,1], index: 3, kind: input, shape index: {}]
  %s4 = inlined_call_operand.vmem [shape: f32[4,8], index: 4, kind: input, shape index: {}]
  %s5 = inlined_call_operand.vmem [shape: f32[4,1], index: 5, kind: input, shape index: {}]
  %s6 = inlined_call_operand.hbm [shape: f32[2,4,256], index: 6, kind: output, shape index: {}]
  %s7 = sld [smem:[#allocation0]]
  $region65: #{tpu_custom_call.1} parent=0
    _
  %s9 = ssub.s32 1, %s7
  %s10 = scalar_select 0, %s9, %s7
  $region1: #{tpu_custom_call.1} parent=0
    #allocation3 [shape = 'u8[8192]{0}', space=vmem, size = 0x2000, scoped, tag = 'input window, operand 0']
    #allocation4 [shape = 's32[2]{0}', space=sflag, size = 0x8, scoped, tag = 'scoped memory for tpu_custom_call.1']
    #allocation5 [shape = 's32[2]{0}', space=sflag, size = 0x8, scoped, tag = 'scoped memory for tpu_custom_call.1']
    #allocation6 [shape = 'u8[16384]{0}', space=vmem, size = 0x4000, scoped, tag = 'input window, operand 1, single buffered']
    #allocation7 [shape = 's32[1]{0}', space=sflag, size = 0x4, scoped, tag = 'scoped memory for tpu_custom_call.1']
    #allocation8 [shape = 'u8[8192]{0}', space=vmem, size = 0x2000, scoped, tag = 'output window, operand 0']
    %11 = vsyncpa [#allocation4], 0
    %s12 = scalar_lea.sflag [#allocation4], 1
    %13 = vsyncpa %s12, 0
    %14 = vsyncpa [#allocation7], 0
    %15 = vsyncpa [#allocation5], 0
    %s16 = scalar_lea.sflag [#allocation5], 1
    %17 = vsyncpa %s16, 0
    loop: start=0, step=1, limit=4
    $region2: #{tpu_custom_call.1} parent=1 // loop_pre_header
      _
    $region3: #{tpu_custom_call.1} parent=1 // loop_header
      %s19 = sphi 0, %s23
      %p20 = scmp.ge.s32.totalorder %s19, 4
      %s29 = sphi 0, %s31
      %s32 = sphi 0, %s29
      %s33 = sphi 0, %s32
      %s49 = sphi 0, %s33
      %s53 = sphi 0, %s53
      %s55 = sphi 0, %s53
      %s56 = sphi 0, %s55
      %s70 = sphi 0, %s56
      %s74 = sphi 0, %s74
      %s76 = sphi 0, %s74
      %s77 = sphi 0, %s76
      %s91 = sphi 0, %s77
      %s95 = sphi 0, %s95
      %s97 = sphi 0, %s95
      %s98 = sphi 0, %s97
      %s112 = sphi 0, %s98
      %s116 = sphi 0, %s116
      %s118 = sphi 0, %s116
      %s119 = sphi 0, %s118
      %s133 = sphi 0, %s119
      %s137 = sphi 0, %s137
      %s139 = sphi 0, %s137
      %s140 = sphi 0, %s139
      %s154 = sphi 0, %s140
      %s160 = sphi 0, %s162
      %s163 = sphi 0, %s160
      %s164 = sphi 0, %s163
      %s180 = sphi 0, %s164
    $region4: #{tpu_custom_call.1} parent=1 // loop_header_branch
      %22 = sbr.rel (%p20) target = $region8
    $region5: #{tpu_custom_call.1} parent=1 // loop_body
      %s24 = ssub.s32 %s19, 1
      %s25 = ssub.s32 %s19, 2
      %s26 = sadd.s32 %s19, 1
      %s27 = ssub.s32 %s19, %s26
      %p28 = scmp.eq.s32.totalorder %s27, 0
      %s30 = sadd.s32 %s29, 1
      %s31 = scalar_select %p28, %s29, %s30
      %p34 = pneg %p28
      %p35 = scmp.eq.s32.totalorder %s19, 1
      %p36 = por %p34, %p35
      %p37 = scmp.ne.s32.totalorder %s29, %s32
      %p38 = scmp.eq.s32.totalorder %s19, 0
      %p39 = por %p37, %p38
      %p40 = scmp.ne.s32.totalorder %s29, %s32
      %p41 = scmp.eq.s32.totalorder %s24, 1
      %p42 = por %p40, %p41
      %p43 = scmp.ne.s32.totalorder %s32, %s33
      %p44 = scmp.eq.s32.totalorder %s24, 0
      %p45 = por %p43, %p44
      %p46 = scmp.ne.s32.totalorder %s32, %s33
      %p47 = scmp.eq.s32.totalorder %s25, 1
      %p48 = por %p46, %p47
      %p50 = scmp.ne.s32.totalorder %s33, %s49
      %p51 = scmp.eq.s32.totalorder %s25, 0
      %p52 = por %p50, %p51
      %s54 = sadd.s32 %s53, 1
      %p57 = scmp.eq.s32.totalorder %s19, 1
      %p58 = scmp.ne.s32.totalorder %s53, %s55
      %p59 = scmp.eq.s32.totalorder %s19, 0
      %p60 = por %p58, %p59
      %p61 = scmp.ne.s32.totalorder %s53, %s55
      %p62 = scmp.eq.s32.totalorder %s24, 1
      %p63 = por %p61, %p62
      %p64 = scmp.ne.s32.totalorder %s55, %s56
      %p65 = scmp.eq.s32.totalorder %s24, 0
      %p66 = por %p64, %p65
      %p67 = scmp.ne.s32.totalorder %s55, %s56
      %p68 = scmp.eq.s32.totalorder %s25, 1
      %p69 = por %p67, %p68
      %p71 = scmp.ne.s32.totalorder %s56, %s70
      %p72 = scmp.eq.s32.totalorder %s25, 0
      %p73 = por %p71, %p72
      %s75 = sadd.s32 %s74, 1
      %p78 = scmp.eq.s32.totalorder %s19, 1
      %p79 = scmp.ne.s32.totalorder %s74, %s76
      %p80 = scmp.eq.s32.totalorder %s19, 0
      %p81 = por %p79, %p80
      %p82 = scmp.ne.s32.totalorder %s74, %s76
      %p83 = scmp.eq.s32.totalorder %s24, 1
      %p84 = por %p82, %p83
      %p85 = scmp.ne.s32.totalorder %s76, %s77
      %p86 = scmp.eq.s32.totalorder %s24, 0
      %p87 = por %p85, %p86
      %p88 = scmp.ne.s32.totalorder %s76, %s77
      %p89 = scmp.eq.s32.totalorder %s25, 1
      %p90 = por %p88, %p89
      %p92 = scmp.ne.s32.totalorder %s77, %s91
      %p93 = scmp.eq.s32.totalorder %s25, 0
      %p94 = por %p92, %p93
      %s96 = sadd.s32 %s95, 1
      %p99 = scmp.eq.s32.totalorder %s19, 1
      %p100 = scmp.ne.s32.totalorder %s95, %s97
      %p101 = scmp.eq.s32.totalorder %s19, 0
      %p102 = por %p100, %p101
      %p103 = scmp.ne.s32.totalorder %s95, %s97
      %p104 = scmp.eq.s32.totalorder %s24, 1
      %p105 = por %p103, %p104
      %p106 = scmp.ne.s32.totalorder %s97, %s98
      %p107 = scmp.eq.s32.totalorder %s24, 0
      %p108 = por %p106, %p107
      %p109 = scmp.ne.s32.totalorder %s97, %s98
      %p110 = scmp.eq.s32.totalorder %s25, 1
      %p111 = por %p109, %p110
      %p113 = scmp.ne.s32.totalorder %s98, %s112
      %p114 = scmp.eq.s32.totalorder %s25, 0
      %p115 = por %p113, %p114
      %s117 = sadd.s32 %s116, 1
      %p120 = scmp.eq.s32.totalorder %s19, 1
      %p121 = scmp.ne.s32.totalorder %s116, %s118
      %p122 = scmp.eq.s32.totalorder %s19, 0
      %p123 = por %p121, %p122
      %p124 = scmp.ne.s32.totalorder %s116, %s118
      %p125 = scmp.eq.s32.totalorder %s24, 1
      %p126 = por %p124, %p125
      %p127 = scmp.ne.s32.totalorder %s118, %s119
      %p128 = scmp.eq.s32.totalorder %s24, 0
      %p129 = por %p127, %p128
      %p130 = scmp.ne.s32.totalorder %s118, %s119
      %p131 = scmp.eq.s32.totalorder %s25, 1
      %p132 = por %p130, %p131
      %p134 = scmp.ne.s32.totalorder %s119, %s133
      %p135 = scmp.eq.s32.totalorder %s25, 0
      %p136 = por %p134, %p135
      %s138 = sadd.s32 %s137, 1
      %p141 = scmp.eq.s32.totalorder %s19, 1
      %p142 = scmp.ne.s32.totalorder %s137, %s139
      %p143 = scmp.eq.s32.totalorder %s19, 0
      %p144 = por %p142, %p143
      %p145 = scmp.ne.s32.totalorder %s137, %s139
      %p146 = scmp.eq.s32.totalorder %s24, 1
      %p147 = por %p145, %p146
      %p148 = scmp.ne.s32.totalorder %s139, %s140
      %p149 = scmp.eq.s32.totalorder %s24, 0
      %p150 = por %p148, %p149
      %p151 = scmp.ne.s32.totalorder %s139, %s140
      %p152 = scmp.eq.s32.totalorder %s25, 1
      %p153 = por %p151, %p152
      %p155 = scmp.ne.s32.totalorder %s140, %s154
      %p156 = scmp.eq.s32.totalorder %s25, 0
      %p157 = por %p155, %p156
      %s158 = ssub.s32 %s19, %s26
      %p159 = scmp.eq.s32.totalorder %s158, 0
      %s161 = sadd.s32 %s160, 1
      %s162 = scalar_select %p159, %s160, %s161
      %p165 = pneg %p159
      %p166 = scmp.eq.s32.totalorder %s19, 1
      %p167 = por %p165, %p166
      %p168 = scmp.ne.s32.totalorder %s160, %s163
      %p169 = scmp.eq.s32.totalorder %s19, 0
      %p170 = por %p168, %p169
      %p171 = scmp.ne.s32.totalorder %s160, %s163
      %p172 = scmp.eq.s32.totalorder %s24, 1
      %p173 = por %p171, %p172
      %p174 = scmp.ne.s32.totalorder %s163, %s164
      %p175 = scmp.eq.s32.totalorder %s24, 0
      %p176 = por %p174, %p175
      %p177 = scmp.ne.s32.totalorder %s163, %s164
      %p178 = scmp.eq.s32.totalorder %s25, 1
      %p179 = por %p177, %p178
      %p181 = scmp.ne.s32.totalorder %s164, %s180
      %p182 = scmp.eq.s32.totalorder %s25, 0
      %p183 = por %p181, %p182
      %p184 = scmp.le.s32.totalorder 1, %s19
      %p185 = scmp.lt.s32.totalorder %s19, 3
      %p186 = pnand %p184, %p185
      %p187 = pneg %p186
      // Predicated region
      $region9: #{tpu_custom_call.1} parent=5 // pred_check
        _
      $region10: #{tpu_custom_call.1} parent=5 // pred_check_branch
        %189 = sbr.rel (%p186) target = $region12
      $region11: #{tpu_custom_call.1} parent=5 // pred_region
        %s190 = ssub.s32 %s19, 1
        // Predicated region
        $region13: #{tpu_custom_call.1} parent=11 // pred_check
          %p191 = pneg %p66
        $region14: #{tpu_custom_call.1} parent=11 // pred_check_branch
          %193 = sbr.rel (%p191) target = $region16
        $region15: #{tpu_custom_call.1} parent=11 // pred_region
          %195 = vsyncadd [#allocation7], 0
          %s196 = sshll.u32 %s1, 4
          %s197 = int_to_ptr.hbm [resolvable:$true] %s196
          %s198 = sshll.u32 [#allocation6], 4
          %s199 = int_to_ptr.vmem [resolvable:$true] %s198
          %204 = dma.hbm_to_vmem [thread:$0]  %s197, 512, %s199, [#allocation7], 256, 256, 16
        $region16: #{tpu_custom_call.1} parent=11 // pred_fallthru
          _
        // Predicated region
        $region17: #{tpu_custom_call.1} parent=11 // pred_check
          %p205 = pneg %p87
        $region18: #{tpu_custom_call.1} parent=11 // pred_check_branch
          %207 = sbr.rel (%p205) target = $region20
        $region19: #{tpu_custom_call.1} parent=11 // pred_region
          _
        $region20: #{tpu_custom_call.1} parent=11 // pred_fallthru
          _
        // Predicated region
        $region21: #{tpu_custom_call.1} parent=11 // pred_check
          %p208 = pneg %p108
        $region22: #{tpu_custom_call.1} parent=11 // pred_check_branch
          %210 = sbr.rel (%p208) target = $region24
        $region23: #{tpu_custom_call.1} parent=11 // pred_region
          _
        $region24: #{tpu_custom_call.1} parent=11 // pred_fallthru
          _
        // Predicated region
        $region25: #{tpu_custom_call.1} parent=11 // pred_check
          %p211 = pneg %p129
        $region26: #{tpu_custom_call.1} parent=11 // pred_check_branch
          %213 = sbr.rel (%p211) target = $region28
        $region27: #{tpu_custom_call.1} parent=11 // pred_region
          _
        $region28: #{tpu_custom_call.1} parent=11 // pred_fallthru
          _
        // Predicated region
        $region29: #{tpu_custom_call.1} parent=11 // pred_check
          %p214 = pneg %p150
        $region30: #{tpu_custom_call.1} parent=11 // pred_check_branch
          %216 = sbr.rel (%p214) target = $region32
        $region31: #{tpu_custom_call.1} parent=11 // pred_region
          _
        $region32: #{tpu_custom_call.1} parent=11 // pred_fallthru
          _
      $region12: #{tpu_custom_call.1} parent=5 // pred_fallthru
        _
      %p217 = scmp.lt.s32.totalorder %s19, 2
      // Predicated region
      $region33: #{tpu_custom_call.1} parent=5 // pred_check
        %p218 = pneg %p217
      $region34: #{tpu_custom_call.1} parent=5 // pred_check_branch
        %220 = sbr.rel (%p218) target = $region36
      $region35: #{tpu_custom_call.1} parent=5 // pred_region
        // Predicated region
        $region37: #{tpu_custom_call.1} parent=35 // pred_check
          %p221 = pneg %p39
        $region38: #{tpu_custom_call.1} parent=35 // pred_check_branch
          %223 = sbr.rel (%p221) target = $region40
        $region39: #{tpu_custom_call.1} parent=35 // pred_region
          %s224 = sand.u32 %s29, 1
          %s225 = scalar_lea.sflag [#allocation4], %s224
          %s226 = sand.u32 %s29, 1
          %s227 = smul.addr %s226, 8
          %s228 = scalar_lea.vmem [#allocation3], %s227
          %230 = vsyncadd %s225, 0
          %s231 = smul.addr %s19, 2
          %s232 = smul.addr %s231, 4
          %s233 = scalar_lea.hbm %s0, %s232
          %s235 = sshll.u32 %s233, 4
          %s236 = int_to_ptr.hbm [resolvable:$true] %s235
          %s237 = sshll.u32 %s228, 4
          %s238 = int_to_ptr.vmem [resolvable:$true] %s237
          %240 = dma.hbm_to_vmem [thread:$0]  %s236, 128, %s238, %s225
        $region40: #{tpu_custom_call.1} parent=35 // pred_fallthru
          _
      $region36: #{tpu_custom_call.1} parent=5 // pred_fallthru
        _
      %p241 = scmp.le.s32.totalorder 1, %s19
      %p242 = scmp.lt.s32.totalorder %s19, 3
      %p243 = pnand %p241, %p242
      %p244 = pneg %p243
      // Predicated region
      $region41: #{tpu_custom_call.1} parent=5 // pred_check
        _
      $region42: #{tpu_custom_call.1} parent=5 // pred_check_branch
        %246 = sbr.rel (%p243) target = $region44
      $region43: #{tpu_custom_call.1} parent=5 // pred_region
        %s247 = ssub.s32 %s19, 1
        %s248 = sand.u32 %s32, 1
        %s249 = scalar_lea.sflag [#allocation4], %s248
        %s250 = sand.u32 %s32, 1
        %s251 = smul.addr %s250, 8
        %s252 = scalar_lea.vmem [#allocation3], %s251
        // Predicated region
        $region45: #{tpu_custom_call.1} parent=43 // pred_check
          %p253 = pneg %p45
        $region46: #{tpu_custom_call.1} parent=43 // pred_check_branch
          %255 = sbr.rel (%p253) target = $region48
        $region47: #{tpu_custom_call.1} parent=43 // pred_region
          %257 = dma.done %s249, 128
        $region48: #{tpu_custom_call.1} parent=43 // pred_fallthru
          _
        // Predicated region
        $region49: #{tpu_custom_call.1} parent=43 // pred_check
          %p258 = pneg %p66
        $region50: #{tpu_custom_call.1} parent=43 // pred_check_branch
          %260 = sbr.rel (%p258) target = $region52
        $region51: #{tpu_custom_call.1} parent=43 // pred_region
          %262 = dma.done [#allocation7], 512
        $region52: #{tpu_custom_call.1} parent=43 // pred_fallthru
          _
        %s263 = sand.u32 %s32, 1
        %s264 = scalar_lea.sflag [#allocation4], %s263
        %s265 = sand.u32 %s32, 1
        %s266 = smul.addr %s265, 8
        %s267 = scalar_lea.vmem [#allocation3], %s266
        %p268 = pneg %p45
        %p269 = pneg %p42
        %p270 = pneg %p66
        %p271 = pneg %p63
        %p272 = pneg %p87
        %p273 = pneg %p84
        %p274 = pneg %p108
        %p275 = pneg %p105
        %p276 = pneg %p129
        %p277 = pneg %p126
        %p278 = pneg %p150
        %p279 = pneg %p147
        %p280 = pneg %p176
        %p281 = pneg %p173
        %s282 = sand.u32 %s163, 1
        %s283 = scalar_lea.sflag [#allocation5], %s282
        %s284 = sand.u32 %s163, 1
        %s285 = smul.addr %s284, 8
        %s286 = scalar_lea.vmem [#allocation8], %s285
        %v287 = vld [vmem:[%s252] sm:$0xff]
        %v288 = vmax.f32 %v287, 0.0
        %v289 = vld [vmem:[#allocation6] sm:$0xff]
        %v290 = vld [vmem:[#allocation6 + $0x8] sm:$0xff]
        %v291 = vld [vmem:[#allocation6 + $0x10] sm:$0x1]
        %v292 = vld [vmem:[#allocation6 + $0x18] sm:$0x1]
        %294 = vst [vmem:[#allocation1] ss:$2 sm:$0xff] %v288
        %v295 = vld.sshfl [vmem:[#allocation1 + $0x8] sm:$0xff pattern:$0x75316420]
        %296 = vrot.lane.b32.xlu0 %v295, 17
        %v297 = vpop.permute.xlu0 %296
        %299 = vst [vmem:[#allocation1] ss:$2 sm:$0xff] %v288
        %v300 = vld.sshfl [vmem:[#allocation1] sm:$0xff pattern:$0x75316420]
        %v301 = vld.sshfl [vmem:[#allocation1 + $0x8] sm:$0xff pattern:$0x75316420]
        %302 = vrot.lane.b32.xlu0 %v300, 17
        %v303 = vpop.permute.xlu0 %302
        %304 = vrot.lane.b32.xlu0 %v301, 17
        %v305 = vpop.permute.xlu0 %304
        %vm306 = vcmask 138240
        %v307 = vsel %vm306, %v303, %v305
        %v310 = vsel %vm306, %v297, %v303
        %v311 = vperm.slane %v289, 0
        %v312 = vperm.slane %v290, 0
        %v313 = vmul.f32 %v310, %v311
        %v314 = vmul.f32 %v307, %v312
        %315 = vst [vmem:[#allocation2] sm:$0xf] %v313
        %316 = vst [vmem:[#allocation2 + $0x8] sm:$0xf] %v314
        %317 = vst [vmem:[#allocation1] ss:$2 sm:$0xff] %v288
        %v318 = vld.sshfl [vmem:[#allocation1 + $0x8] sm:$0xff pattern:$0x75316420]
        %319 = vrot.lane.b32.xlu0 %v318, 16
        %v320 = vpop.permute.xlu0 %319
        %322 = vst [vmem:[#allocation1] ss:$2 sm:$0xff] %v288
        %v323 = vld.sshfl [vmem:[#allocation1] sm:$0xff pattern:$0x75316420]
        %v324 = vld.sshfl [vmem:[#allocation1 + $0x8] sm:$0xff pattern:$0x75316420]
        %325 = vrot.lane.b32.xlu0 %v323, 16
        %v326 = vpop.permute.xlu0 %325
        %327 = vrot.lane.b32.xlu0 %v324, 16
        %v328 = vpop.permute.xlu0 %327
        %vm329 = vcmask 130048
        %v330 = vsel %vm329, %v326, %v328
        %v333 = vsel %vm329, %v320, %v326
        %v334 = vperm.slane %v289, 1
        %v335 = vperm.slane %v290, 1
        %v336 = vmul.f32 %v333, %v334
        %v337 = vmul.f32 %v330, %v335
        %v340 = vrot.slane %v336, 4
        %v341 = vrot.slane %v337, 4
        %344 = vst [vmem:[#allocation2] sm:$0xf0] %v340
        %345 = vst [vmem:[#allocation2 + $0x8] sm:$0xf0] %v341
        %346 = vst [vmem:[#allocation1] ss:$2 sm:$0xff] %v288
        %v347 = vld.sshfl [vmem:[#allocation1 + $0x8] sm:$0xff pattern:$0x75316420]
        %348 = vrot.lane.b32.xlu0 %v347, 15
        %v349 = vpop.permute.xlu0 %348
        %351 = vst [vmem:[#allocation1] ss:$2 sm:$0xff] %v288
        %v352 = vld.sshfl [vmem:[#allocation1] sm:$0xff pattern:$0x75316420]
        %v353 = vld.sshfl [vmem:[#allocation1 + $0x8] sm:$0xff pattern:$0x75316420]
        %354 = vrot.lane.b32.xlu0 %v352, 15
        %v355 = vpop.permute.xlu0 %354
        %356 = vrot.lane.b32.xlu0 %v353, 15
        %v357 = vpop.permute.xlu0 %356
        %vm358 = vcmask 121856
        %v359 = vsel %vm358, %v355, %v357
        %v362 = vsel %vm358, %v349, %v355
        %v363 = vperm.slane %v289, 2
        %v364 = vperm.slane %v290, 2
        %v365 = vmul.f32 %v362, %v363
        %v366 = vmul.f32 %v359, %v364
        %367 = vst [vmem:[#allocation2 + $0x10] sm:$0xf] %v365
        %368 = vst [vmem:[#allocation2 + $0x18] sm:$0xf] %v366
        %369 = vst [vmem:[#allocation1] ss:$2 sm:$0xff] %v288
        %v370 = vld.sshfl [vmem:[#allocation1 + $0x8] sm:$0xff pattern:$0x75316420]
        %371 = vrot.lane.b32.xlu0 %v370, 1
        %v372 = vpop.permute.xlu0 %371
        %374 = vst [vmem:[#allocation1] ss:$2 sm:$0xff] %v288
        %v375 = vld.sshfl [vmem:[#allocation1] sm:$0xff pattern:$0x75316420]
        %v376 = vld.sshfl [vmem:[#allocation1 + $0x8] sm:$0xff pattern:$0x75316420]
        %377 = vrot.lane.b32.xlu0 %v375, 1
        %v378 = vpop.permute.xlu0 %377
        %379 = vrot.lane.b32.xlu0 %v376, 1
        %v380 = vpop.permute.xlu0 %379
        %vm381 = vcmask 7168
        %v382 = vsel %vm381, %v378, %v380
        %v385 = vsel %vm381, %v372, %v378
        %v386 = vperm.slane %v289, 3
        %v387 = vperm.slane %v290, 3
        %v388 = vmul.f32 %v385, %v386
        %v389 = vmul.f32 %v382, %v387
        %v392 = vrot.slane %v388, 4
        %v393 = vrot.slane %v389, 4
        %396 = vst [vmem:[#allocation2 + $0x10] sm:$0xf0] %v392
        %397 = vst [vmem:[#allocation2 + $0x18] sm:$0xf0] %v393
        %v398 = vperm.slane %v289, 4
        %v399 = vperm.slane %v290, 4
        %v402 = vrot.slane %v399, 4
        %vm403 = vcmask 1043456
        %v404 = vsel %vm403, %v398, %v402
        %v406 = vmul.f32 %v288, %v404
        %408 = vst [vmem:[#allocation1] ss:$2 sm:$0xff] %v406
        %v409 = vld.sshfl [vmem:[#allocation1] sm:$0xff pattern:$0x75316420]
        %v410 = vld.sshfl [vmem:[#allocation1 + $0x8] sm:$0xff pattern:$0x75316420]
        %413 = vst [vmem:[#allocation2 + $0x20] sm:$0xf] %v409
        %414 = vst [vmem:[#allocation2 + $0x28] sm:$0xf] %v410
        %415 = vst [vmem:[#allocation1] ss:$2 sm:$0xff] %v288
        %v416 = vld.sshfl [vmem:[#allocation1] sm:$0xff pattern:$0x75316420]
        %v417 = vld.sshfl [vmem:[#allocation1 + $0x8] sm:$0xff pattern:$0x75316420]
        %418 = vrot.lane.b32.xlu0 %v416, 127
        %v419 = vpop.permute.xlu0 %418
        %420 = vrot.lane.b32.xlu0 %v417, 127
        %v421 = vpop.permute.xlu0 %420
        %vm422 = vcmask 1039360
        %v423 = vsel %vm422, %v419, %v421
        %426 = vst [vmem:[#allocation1] ss:$2 sm:$0xff] %v288
        %v427 = vld.sshfl [vmem:[#allocation1] sm:$0xff pattern:$0x75316420]
        %428 = vrot.lane.b32.xlu0 %v427, 127
        %v429 = vpop.permute.xlu0 %428
        %v431 = vsel %vm422, %v421, %v429
        %v432 = vperm.slane %v289, 5
        %v433 = vperm.slane %v290, 5
        %v434 = vmul.f32 %v423, %v432
        %v435 = vmul.f32 %v431, %v433
        %v438 = vrot.slane %v434, 4
        %v439 = vrot.slane %v435, 4
        %442 = vst [vmem:[#allocation2 + $0x20] sm:$0xf0] %v438
        %443 = vst [vmem:[#allocation2 + $0x28] sm:$0xf0] %v439
        %444 = vst [vmem:[#allocation1] ss:$2 sm:$0xff] %v288
        %v445 = vld.sshfl [vmem:[#allocation1] sm:$0xff pattern:$0x75316420]
        %v446 = vld.sshfl [vmem:[#allocation1 + $0x8] sm:$0xff pattern:$0x75316420]
        %447 = vrot.lane.b32.xlu0 %v445, 113
        %v448 = vpop.permute.xlu0 %447
        %449 = vrot.lane.b32.xlu0 %v446, 113
        %v450 = vpop.permute.xlu0 %449
        %vm451 = vcmask 924672
        %v452 = vsel %vm451, %v448, %v450
        %455 = vst [vmem:[#allocation1] ss:$2 sm:$0xff] %v288
        %v456 = vld.sshfl [vmem:[#allocation1] sm:$0xff pattern:$0x75316420]
        %457 = vrot.lane.b32.xlu0 %v456, 113
        %v458 = vpop.permute.xlu0 %457
        %v460 = vsel %vm451, %v450, %v458
        %v461 = vperm.slane %v289, 6
        %v462 = vperm.slane %v290, 6
        %v463 = vmul.f32 %v452, %v461
        %v464 = vmul.f32 %v460, %v462
        %465 = vst [vmem:[#allocation2 + $0x30] sm:$0xf] %v463
        %466 = vst [vmem:[#allocation2 + $0x38] sm:$0xf] %v464
        %467 = vst [vmem:[#allocation1] ss:$2 sm:$0xff] %v288
        %v468 = vld.sshfl [vmem:[#allocation1] sm:$0xff pattern:$0x75316420]
        %v469 = vld.sshfl [vmem:[#allocation1 + $0x8] sm:$0xff pattern:$0x75316420]
        %470 = vrot.lane.b32.xlu0 %v468, 112
        %v471 = vpop.permute.xlu0 %470
        %472 = vrot.lane.b32.xlu0 %v469, 112
        %v473 = vpop.permute.xlu0 %472
        %vm474 = vcmask 916480
        %v475 = vsel %vm474, %v471, %v473
        %478 = vst [vmem:[#allocation1] ss:$2 sm:$0xff] %v288
        %v479 = vld.sshfl [vmem:[#allocation1] sm:$0xff pattern:$0x75316420]
        %480 = vrot.lane.b32.xlu0 %v479, 112
        %v481 = vpop.permute.xlu0 %480
        %v483 = vsel %vm474, %v473, %v481
        %v484 = vperm.slane %v289, 7
        %v485 = vperm.slane %v290, 7
        %v486 = vmul.f32 %v475, %v484
        %v487 = vmul.f32 %v483, %v485
        %v490 = vrot.slane %v486, 4
        %v491 = vrot.slane %v487, 4
        %494 = vst [vmem:[#allocation2 + $0x30] sm:$0xf0] %v490
        %495 = vst [vmem:[#allocation2 + $0x38] sm:$0xf0] %v491
        %496 = vst [vmem:[#allocation1] ss:$2 sm:$0xff] %v288
        %v497 = vld.sshfl [vmem:[#allocation1] sm:$0xff pattern:$0x75316420]
        %v498 = vld.sshfl [vmem:[#allocation1 + $0x8] sm:$0xff pattern:$0x75316420]
        %499 = vrot.lane.b32.xlu0 %v497, 111
        %v500 = vpop.permute.xlu0 %499
        %501 = vrot.lane.b32.xlu0 %v498, 111
        %v502 = vpop.permute.xlu0 %501
        %vm503 = vcmask 908288
        %v504 = vsel %vm503, %v500, %v502
        %507 = vst [vmem:[#allocation1] ss:$2 sm:$0xff] %v288
        %v508 = vld.sshfl [vmem:[#allocation1] sm:$0xff pattern:$0x75316420]
        %509 = vrot.lane.b32.xlu0 %v508, 111
        %v510 = vpop.permute.xlu0 %509
        %v512 = vsel %vm503, %v502, %v510
        %v513 = vperm.slane %v291, 0
        %v514 = vperm.slane %v292, 0
        %v515 = vmul.f32 %v504, %v513
        %v516 = vmul.f32 %v512, %v514
        %517 = vst [vmem:[#allocation2 + $0x40] sm:$0xf] %v515
        %518 = vst [vmem:[#allocation2 + $0x48] sm:$0xf] %v516
        %v519 = vld [vmem:[#allocation2] sm:$0xff]
        %v520 = vld [vmem:[#allocation2 + $0x8] sm:$0xff]
        %v521 = vld [vmem:[#allocation2 + $0x10] sm:$0xff]
        %v522 = vld [vmem:[#allocation2 + $0x18] sm:$0xff]
        %v523 = vld [vmem:[#allocation2 + $0x20] sm:$0xff]
        %v524 = vld [vmem:[#allocation2 + $0x28] sm:$0xff]
        %v525 = vld [vmem:[#allocation2 + $0x30] sm:$0xff]
        %v526 = vld [vmem:[#allocation2 + $0x38] sm:$0xff]
        %v527 = vld [vmem:[#allocation2 + $0x40] sm:$0xf]
        %v528 = vld [vmem:[#allocation2 + $0x48] sm:$0xf]
        %v529 = vld [vmem:[%s2] sm:$0xff]
        %v530 = vld [vmem:[%s3] sm:$0xff]
        %532 = vset.pattern.permute.xlu0 0
        %533 = vperm.xlu0 %532, %v530
        %v534 = vpop.permute.xlu0 %533
        %vm536 = vcmask 293888
        %v538 = vsel %vm536, %v529, 0
        %v541 = vsel %vm403, %v527, 0
        %v544 = vsel %vm403, %v528, 0
        %546 = vmatpush.msra.mxu0 0.0
        %547 = vmatpush.msra.mxu0 0.0
        %548 = vmatpush.msra.mxu0 0.0
        %549 = vmatpush.msra.mxu0 0.0
        %550 = vmatpush.msra.mxu0 0.0
        %551 = vmatpush.msra.mxu0 0.0
        %552 = vmatpush.msra.mxu0 0.0
        %553 = vmatpush.msra.mxu0 0.0
        %554 = vmatpush.msra.mxu0 0.0
        %555 = vmatpush.msra.mxu0 0.0
        %556 = vmatpush.msra.mxu0 0.0
        %557 = vmatpush.msra.mxu0 %v541
        %558 = vmatpush.msra.mxu0 %v525
        %559 = vmatpush.msra.mxu0 %v523
        %560 = vmatpush.msra.mxu0 %v521
        %561 = vmatpush.msra.mxu0 %v519
        %562 = vmatmul.f32.gmra.mxu0 %v538
        %v563 = vpop.f32.mrf.mxu0
        %v564 = vadd.f32 %v534, %v563
        %565 = vdwg.mxu0
        %566 = vmatpush.msra.mxu0 0.0
        %567 = vmatpush.msra.mxu0 0.0
        %568 = vmatpush.msra.mxu0 0.0
        %569 = vmatpush.msra.mxu0 0.0
        %570 = vmatpush.msra.mxu0 0.0
        %571 = vmatpush.msra.mxu0 0.0
        %572 = vmatpush.msra.mxu0 0.0
        %573 = vmatpush.msra.mxu0 0.0
        %574 = vmatpush.msra.mxu0 0.0
        %575 = vmatpush.msra.mxu0 0.0
        %576 = vmatpush.msra.mxu0 0.0
        %577 = vmatpush.msra.mxu0 %v544
        %578 = vmatpush.msra.mxu0 %v526
        %579 = vmatpush.msra.mxu0 %v524
        %580 = vmatpush.msra.mxu0 %v522
        %581 = vmatpush.msra.mxu0 %v520
        %582 = vmatmul.f32.gmra.mxu0 %v538
        %v583 = vpop.f32.mrf.mxu0
        %v584 = vadd.f32 %v534, %v583
        %585 = vdwg.mxu0
        %v586 = vmax.f32 %v564, 0.0
        %v587 = vmax.f32 %v584, 0.0
        %v588 = vld [vmem:[%s4] sm:$0xf]
        %v589 = vld [vmem:[%s5] sm:$0xf]
        %591 = vset.pattern.permute.xlu0 0
        %592 = vperm.xlu0 %591, %v589
        %v593 = vpop.permute.xlu0 %592
        %vm595 = vcmask 64512
        %v597 = vsel %vm595, %v588, 0
        %599 = vmatpush.msra.mxu0 0.0
        %600 = vmatpush.msra.mxu0 0.0
        %601 = vmatpush.msra.mxu0 0.0
        %602 = vmatpush.msra.mxu0 0.0
        %603 = vmatpush.msra.mxu0 0.0
        %604 = vmatpush.msra.mxu0 0.0
        %605 = vmatpush.msra.mxu0 0.0
        %606 = vmatpush.msra.mxu0 0.0
        %607 = vmatpush.msra.mxu0 0.0
        %608 = vmatpush.msra.mxu0 0.0
        %609 = vmatpush.msra.mxu0 0.0
        %610 = vmatpush.msra.mxu0 0.0
        %611 = vmatpush.msra.mxu0 0.0
        %612 = vmatpush.msra.mxu0 0.0
        %613 = vmatpush.msra.mxu0 0.0
        %614 = vmatpush.msra.mxu0 %v586
        %615 = vmatmul.f32.gmra.mxu0 %v597
        %v616 = vpop.f32.mrf.mxu0
        %v617 = vadd.f32 %v593, %v616
        %618 = vdwg.mxu0
        %619 = vmatpush.msra.mxu0 0.0
        %620 = vmatpush.msra.mxu0 0.0
        %621 = vmatpush.msra.mxu0 0.0
        %622 = vmatpush.msra.mxu0 0.0
        %623 = vmatpush.msra.mxu0 0.0
        %624 = vmatpush.msra.mxu0 0.0
        %625 = vmatpush.msra.mxu0 0.0
        %626 = vmatpush.msra.mxu0 0.0
        %627 = vmatpush.msra.mxu0 0.0
        %628 = vmatpush.msra.mxu0 0.0
        %629 = vmatpush.msra.mxu0 0.0
        %630 = vmatpush.msra.mxu0 0.0
        %631 = vmatpush.msra.mxu0 0.0
        %632 = vmatpush.msra.mxu0 0.0
        %633 = vmatpush.msra.mxu0 0.0
        %634 = vmatpush.msra.mxu0 %v587
        %635 = vmatmul.f32.gmra.mxu0 %v597
        %v636 = vpop.f32.mrf.mxu0
        %v637 = vadd.f32 %v593, %v636
        %638 = vdwg.mxu0
        %640 = vst [vmem:[#allocation1] ss:$2 sm:$0xff] %v287
        %v641 = vld.sshfl [vmem:[#allocation1] sm:$0xff pattern:$0x75316420]
        %v642 = vld.sshfl [vmem:[#allocation1 + $0x8] sm:$0xff pattern:$0x75316420]
        %v645 = vadd.f32 %v617, %v641
        %v646 = vadd.f32 %v637, %v642
        %v649 = vrot.slane %v646, 4
        %v650 = vsel %vm403, %v645, %v649
        %652 = vst [vmem:[%s286] sm:$0xff] %v650
        %s653 = sand.u32 %s163, 1
        %s654 = scalar_lea.sflag [#allocation5], %s653
        %s655 = sand.u32 %s163, 1
        %s656 = smul.addr %s655, 8
        %s657 = scalar_lea.vmem [#allocation8], %s656
        // Predicated region
        $region53: #{tpu_custom_call.1} parent=43 // pred_check
          %p658 = pneg %p173
        $region54: #{tpu_custom_call.1} parent=43 // pred_check_branch
          %660 = sbr.rel (%p658) target = $region56
        $region55: #{tpu_custom_call.1} parent=43 // pred_region
          %662 = vsyncadd %s654, 0
          %s663 = smul.addr %s24, 2
          %s664 = smul.addr %s663, 4
          %s665 = scalar_lea.hbm %s6, %s664
          %s667 = sshll.u32 %s657, 4
          %s668 = int_to_ptr.vmem [resolvable:$true] %s667
          %s669 = sshll.u32 %s665, 4
          %s670 = int_to_ptr.hbm [resolvable:$true] %s669
          %672 = dma.vmem_to_hbm [thread:$0]  %s668, 128, %s670, %s654
        $region56: #{tpu_custom_call.1} parent=43 // pred_fallthru
          _
      $region44: #{tpu_custom_call.1} parent=5 // pred_fallthru
        _
      %p673 = scmp.le.s32.totalorder 2, %s19
      // Predicated region
      $region57: #{tpu_custom_call.1} parent=5 // pred_check
        %p674 = pneg %p673
      $region58: #{tpu_custom_call.1} parent=5 // pred_check_branch
        %676 = sbr.rel (%p674) target = $region60
      $region59: #{tpu_custom_call.1} parent=5 // pred_region
        %s677 = ssub.s32 %s19, 2
        // Predicated region
        $region61: #{tpu_custom_call.1} parent=59 // pred_check
          %p678 = pneg %p179
        $region62: #{tpu_custom_call.1} parent=59 // pred_check_branch
          %680 = sbr.rel (%p678) target = $region64
        $region63: #{tpu_custom_call.1} parent=59 // pred_region
          %s681 = sand.u32 %s164, 1
          %s682 = scalar_lea.sflag [#allocation5], %s681
          %s683 = sand.u32 %s164, 1
          %s684 = smul.addr %s683, 8
          %s685 = scalar_lea.vmem [#allocation8], %s684
          %687 = dma.done %s682, 128
        $region64: #{tpu_custom_call.1} parent=59 // pred_fallthru
          _
      $region60: #{tpu_custom_call.1} parent=5 // pred_fallthru
        _
    $region6: #{tpu_custom_call.1} parent=1 // loop_footer
      %s23 = sadd.s32 1, %s19
    $region7: #{tpu_custom_call.1} parent=1 // loop_footer_branch
      %18 = sbr.rel target = $region3
    $region8: #{tpu_custom_call.1} parent=1 // loop_exit
      _
    %688 = vsyncpa [#allocation4], 1
    %s689 = scalar_lea.sflag [#allocation4], 1
    %690 = vsyncpa %s689, 1
    %691 = vsyncpa [#allocation7], 1
    %692 = vsyncpa [#allocation5], 1
    %s693 = scalar_lea.sflag [#allocation5], 1
    %694 = vsyncpa %s693, 1

</llo_original>
